<compile_context>
chip_gen: v7x
topology: tpu7x:2x2x1
jax: 0.10.0
libtpu: 0.0.40
codegen_flags: <defaults>
</compile_context>

<pallas_src>
import jax
import jax.numpy as jnp
from jax.experimental import pallas as pl
from jax.experimental.pallas import tpu as pltpu


def branch_kernel(x_ref, w1_ref, b1_ref, w2_ref, b2_ref, out_ref):
    # Layer 1: MXU matmul (operands in compute dtype), f32 accumulation,
    # then f32 bias add + ReLU on the VPU.
    h = jnp.dot(x_ref[...], w1_ref[...], preferred_element_type=jnp.float32)
    h = jnp.maximum(h + b1_ref[...], 0.0)
    # Layer 2: cast activations to the weight dtype only if needed (no-op for
    # the f32 path), accumulate in f32, add bias, store lane-dense output.
    y = jnp.dot(h.astype(w2_ref.dtype), w2_ref[...],
                preferred_element_type=jnp.float32)
    out_ref[...] = (y + b2_ref[...]).astype(out_ref.dtype)


def branch_forward(x, w1, b1, w2, b2, *, tile_b=256, compute_dtype=jnp.bfloat16):
    """Fused Linear(512) -> ReLU -> Linear(num_classes).

    x:  (B, C_in)
    w1: (C_in, 512), b1: (1, 512)
    w2: (512, C_out), b2: (1, C_out)
    Returns (B, C_out) in x.dtype.
    """
    B, C_in = x.shape
    H = w1.shape[1]
    C_out = w2.shape[1]
    out_dtype = x.dtype

    # ---- tiling / padding -------------------------------------------------
    # Batch tile must be a multiple of 8 sublanes; shrink it for tiny batches
    # so a 20-row batch is not padded up to 256 rows.
    tile_b = max(8, (tile_b // 8) * 8)
    if B < tile_b:
        tile_b = max(8, pl.cdiv(B, 8) * 8)
    Bp = pl.cdiv(B, tile_b) * tile_b            # padded batch
    Cp = pl.cdiv(C_out, 128) * 128              # lane-dense padded output width

    # ---- dtype handling (bf16 MXU operands, f32 accumulation & biases) ----
    if compute_dtype is not None:
        x_c = x.astype(compute_dtype)
        w1_c = w1.astype(compute_dtype)
        w2_c = w2.astype(compute_dtype)
    else:
        x_c, w1_c, w2_c = x, w1, w2
    b1_p = b1.astype(jnp.float32)
    b2_p = b2.astype(jnp.float32)

    if Bp != B:
        x_c = jnp.pad(x_c, ((0, Bp - B), (0, 0)))
    if Cp != C_out:
        w2_c = jnp.pad(w2_c, ((0, 0), (0, Cp - C_out)))
        b2_p = jnp.pad(b2_p, ((0, 0), (0, Cp - C_out)))

    grid = (Bp // tile_b,)
    out = pl.pallas_call(
        branch_kernel,
        out_shape=jax.ShapeDtypeStruct((Bp, Cp), out_dtype),
        grid_spec=pltpu.PrefetchScalarGridSpec(
            num_scalar_prefetch=0,
            grid=grid,
            in_specs=[
                pl.BlockSpec((tile_b, C_in), lambda i: (i, 0)),  # x tile
                pl.BlockSpec((C_in, H), lambda i: (0, 0)),       # W1 (VMEM-resident)
                pl.BlockSpec((1, H), lambda i: (0, 0)),          # b1 (f32)
                pl.BlockSpec((H, Cp), lambda i: (0, 0)),         # W2 (resident, lane-padded)
                pl.BlockSpec((1, Cp), lambda i: (0, 0)),         # b2 (f32, lane-padded)
            ],
            out_specs=pl.BlockSpec((tile_b, Cp), lambda i: (i, 0)),
        ),
        compiler_params=pltpu.CompilerParams(
            dimension_semantics=("parallel",),
        ),
        cost_estimate=pl.CostEstimate(
            flops=2 * Bp * (C_in * H + H * Cp),
            transcendentals=0,
            bytes_accessed=(Bp * C_in + C_in * H + H * Cp + Bp * Cp) * 4,
        ),
    )(x_c, w1_c, b1_p, w2_c, b2_p)

    # Slice away batch padding and the lane padding of the class dimension.
    return out[:B, :C_out]


def init_params(key, in_channels, num_classes, hidden=512, dtype=jnp.float32):
    # Deterministic PyTorch-style init: U(-1/sqrt(fan_in), 1/sqrt(fan_in)).
    k1, k2, k3, k4 = jax.random.split(key, 4)
    bound1 = 1.0 / jnp.sqrt(in_channels)
    bound2 = 1.0 / jnp.sqrt(hidden)
    w1 = jax.random.uniform(k1, (in_channels, hidden), dtype, -bound1, bound1)
    b1 = jax.random.uniform(k2, (1, hidden), dtype, -bound1, bound1)
    w2 = jax.random.uniform(k3, (hidden, num_classes), dtype, -bound2, bound2)
    b2 = jax.random.uniform(k4, (1, num_classes), dtype, -bound2, bound2)
    return w1, b1, w2, b2


if __name__ == "__main__":
    key = jax.random.PRNGKey(0)
    kx, kp = jax.random.split(key)

    # Small demo shapes; B=20 is deliberately NOT a multiple of the tile to
    # exercise the batch-padding path, and num_classes=6 exercises the
    # lane-padding path.
    B, in_channels, num_classes = 20, 64, 6
    x = jax.random.normal(kx, (B, in_channels), jnp.float32)
    w1, b1, w2, b2 = init_params(kp, in_channels, num_classes)

    # Pure-JAX reference.
    ref = jnp.maximum(x @ w1 + b1, 0.0) @ w2 + b2

    # f32 path (tight tolerance).
    out_f32 = branch_forward(x, w1, b1, w2, b2, compute_dtype=None)
    out_f32 = jax.block_until_ready(out_f32)
    assert out_f32.shape == (B, num_classes)
    assert jnp.allclose(out_f32, ref, atol=1e-5, rtol=1e-5)

    # bf16-operand / f32-accumulate fast path (looser tolerance).
    out_bf16 = branch_forward(x, w1, b1, w2, b2, compute_dtype=jnp.bfloat16)
    out_bf16 = jax.block_until_ready(out_bf16)
    assert out_bf16.shape == (B, num_classes)
    assert jnp.allclose(out_bf16, ref, atol=5e-2, rtol=5e-2)

    print("KERNEL_OK")
</pallas_src>

<mosaic_0001>
module attributes {stable_mosaic.version = 11 : i64} {
  func.func @branch_kernel(%arg0: i32, %arg1: memref<24x64xf32, #tpu.memory_space<vmem>>, %arg2: memref<64x512xf32, #tpu.memory_space<vmem>>, %arg3: memref<1x512xf32, #tpu.memory_space<vmem>>, %arg4: memref<512x128xf32, #tpu.memory_space<vmem>>, %arg5: memref<1x128xf32, #tpu.memory_space<vmem>>, %arg6: memref<24x128xf32, #tpu.memory_space<vmem>>) attributes {dimension_semantics = [#tpu.dimension_semantics<parallel>], iteration_bounds = array<i64: 1>, scalar_prefetch = 0 : i64, scratch_operands = 0 : i64, tpu.core_type = #tpu.core_type<tc>, window_params = [{transform_indices = @transform_0, window_bounds = array<i64: 24, 64>}, {pipeline_mode = #tpu.pipeline_mode<synchronous>, transform_indices = @transform_1, window_bounds = array<i64: 64, 512>}, {pipeline_mode = #tpu.pipeline_mode<synchronous>, transform_indices = @transform_2, window_bounds = array<i64: 1, 512>}, {pipeline_mode = #tpu.pipeline_mode<synchronous>, transform_indices = @transform_3, window_bounds = array<i64: 512, 128>}, {pipeline_mode = #tpu.pipeline_mode<synchronous>, transform_indices = @transform_4, window_bounds = array<i64: 1, 128>}, {transform_indices = @transform_5, window_bounds = array<i64: 24, 128>}]} {
    %c0 = arith.constant 0 : index
    %c0_0 = arith.constant 0 : index
    %0 = vector.load %arg1[%c0, %c0_0] : memref<24x64xf32, #tpu.memory_space<vmem>>, vector<24x64xf32>
    %c0_1 = arith.constant 0 : index
    %c0_2 = arith.constant 0 : index
    %1 = vector.load %arg2[%c0_1, %c0_2] : memref<64x512xf32, #tpu.memory_space<vmem>>, vector<64x512xf32>
    %cst = arith.constant dense<0.000000e+00> : vector<24x512xf32>
    %2 = tpu.matmul %0, %1, %cst {dimension_numbers = #tpu.dot_dimension_numbers<[1], [0], [0], [1], [0, 0, 1, 1], [], []>} : vector<24x64xf32>, vector<64x512xf32>, vector<24x512xf32> -> vector<24x512xf32>
    %c0_3 = arith.constant 0 : index
    %c0_4 = arith.constant 0 : index
    %3 = vector.load %arg3[%c0_3, %c0_4] : memref<1x512xf32, #tpu.memory_space<vmem>>, vector<1x512xf32>
    %4 = vector.broadcast %3 : vector<1x512xf32> to vector<24x512xf32>
    %5 = arith.addf %2, %4 : vector<24x512xf32>
    %cst_5 = arith.constant 0.000000e+00 : f32
    %6 = vector.broadcast %cst_5 : f32 to vector<24x512xf32>
    %7 = arith.maximumf %5, %6 : vector<24x512xf32>
    %c0_6 = arith.constant 0 : index
    %c0_7 = arith.constant 0 : index
    %8 = vector.load %arg4[%c0_6, %c0_7] : memref<512x128xf32, #tpu.memory_space<vmem>>, vector<512x128xf32>
    %cst_8 = arith.constant dense<0.000000e+00> : vector<24x128xf32>
    %9 = tpu.matmul %7, %8, %cst_8 {dimension_numbers = #tpu.dot_dimension_numbers<[1], [0], [0], [1], [0, 0, 1, 1], [], []>} : vector<24x512xf32>, vector<512x128xf32>, vector<24x128xf32> -> vector<24x128xf32>
    %c0_9 = arith.constant 0 : index
    %c0_10 = arith.constant 0 : index
    %10 = vector.load %arg5[%c0_9, %c0_10] : memref<1x128xf32, #tpu.memory_space<vmem>>, vector<1x128xf32>
    %11 = vector.broadcast %10 : vector<1x128xf32> to vector<24x128xf32>
    %12 = arith.addf %9, %11 : vector<24x128xf32>
    %c0_11 = arith.constant 0 : index
    %c0_12 = arith.constant 0 : index
    %13 = vector.load %arg6[%c0_11, %c0_12] : memref<24x128xf32, #tpu.memory_space<vmem>>, vector<24x128xf32>
    tpu.vector_store %arg6[%c0_11, %c0_12], %12 {strides = array<i32>} : memref<24x128xf32, #tpu.memory_space<vmem>>, vector<24x128xf32>,
    return
  }
  func.func @transform_0(%arg0: i32) -> (i32, i32) {
    %c0_i32 = arith.constant 0 : i32
    %c0_i32_0 = arith.constant 0 : i32
    return %arg0, %c0_i32 : i32, i32
  }
  func.func @transform_1(%arg0: i32) -> (i32, i32) {
    %c0_i32 = arith.constant 0 : i32
    %c0_i32_0 = arith.constant 0 : i32
    %c0_i32_1 = arith.constant 0 : i32
    return %c0_i32, %c0_i32_0 : i32, i32
  }
  func.func @transform_2(%arg0: i32) -> (i32, i32) {
    %c0_i32 = arith.constant 0 : i32
    %c0_i32_0 = arith.constant 0 : i32
    %c0_i32_1 = arith.constant 0 : i32
    return %c0_i32, %c0_i32_0 : i32, i32
  }
  func.func @transform_3(%arg0: i32) -> (i32, i32) {
    %c0_i32 = arith.constant 0 : i32
    %c0_i32_0 = arith.constant 0 : i32
    %c0_i32_1 = arith.constant 0 : i32
    return %c0_i32, %c0_i32_0 : i32, i32
  }
  func.func @transform_4(%arg0: i32) -> (i32, i32) {
    %c0_i32 = arith.constant 0 : i32
    %c0_i32_0 = arith.constant 0 : i32
    %c0_i32_1 = arith.constant 0 : i32
    return %c0_i32, %c0_i32_0 : i32, i32
  }
  func.func @transform_5(%arg0: i32) -> (i32, i32) {
    %c0_i32 = arith.constant 0 : i32
    %c0_i32_0 = arith.constant 0 : i32
    return %arg0, %c0_i32 : i32, i32
  }
}

</mosaic_0001>

<llo_original>
// kernel: tpu_custom_call.1
$region0: #{tpu_custom_call.1}
  #allocation0 [shape = 'u32[]', space=smem, size = 0x4, offset = 0x4, fixed_abs, tag = 'smem constant byte address 0x4 - core index']
  #allocation1 [shape = 'u32[144,128]{1,0:T(1,128)}', space=vmem, size = 0x12000, scoped, tag = 'internal scratch']
  %s0 = inlined_call_operand.hbm [shape: f32[24,64], index: 0, kind: input, shape index: {}]
  %s1 = inlined_call_operand.hbm [shape: f32[64,512], index: 1, kind: input, shape index: {}]
  %s2 = inlined_call_operand.vmem [shape: f32[1,512], index: 2, kind: input, shape index: {}]
  %s3 = inlined_call_operand.hbm [shape: f32[512,128], index: 3, kind: input, shape index: {}]
  %s4 = inlined_call_operand.vmem [shape: f32[1,128], index: 4, kind: input, shape index: {}]
  %s5 = inlined_call_operand.hbm [shape: f32[24,128], index: 5, kind: output, shape index: {}]
  %s6 = sld [smem:[#allocation0]]
  $region42: #{tpu_custom_call.1} parent=0
    _
  %s8 = ssub.s32 1, %s6
  %s9 = scalar_select 0, %s8, %s6
  $region1: #{tpu_custom_call.1} parent=0
    #allocation2 [shape = 'u8[12288]{0}', space=vmem, size = 0x3000, scoped, tag = 'input window, operand 0, single buffered']
    #allocation3 [shape = 's32[1]{0}', space=sflag, size = 0x4, scoped, tag = 'scoped memory for tpu_custom_call.1']
    #allocation4 [shape = 's32[1]{0}', space=sflag, size = 0x4, scoped, tag = 'scoped memory for tpu_custom_call.1']
    #allocation5 [shape = 'u8[131072]{0}', space=vmem, size = 0x20000, scoped, tag = 'input window, operand 1, single buffered']
    #allocation6 [shape = 's32[1]{0}', space=sflag, size = 0x4, scoped, tag = 'scoped memory for tpu_custom_call.1']
    #allocation7 [shape = 'u8[262144]{0}', space=vmem, size = 0x40000, scoped, tag = 'input window, operand 3, single buffered']
    #allocation8 [shape = 'u8[12288]{0}', space=vmem, size = 0x3000, scoped, tag = 'output window, operand 0, single buffered']
    %10 = vsyncpa [#allocation3], 0
    %11 = vsyncpa [#allocation6], 0
    %12 = vsyncpa [#allocation4], 0
    // Predicated region
    $region2: #{tpu_custom_call.1} parent=1 // pred_check
      _
    $region3: #{tpu_custom_call.1} parent=1 // pred_check_branch
      %14 = sbr.rel (0) target = $region5
    $region4: #{tpu_custom_call.1} parent=1 // pred_region
      %s16 = ssub.s32 384, 384
      %17 = vsyncadd [#allocation3], %s16
      %s18 = sshll.u32 [#allocation2], 4
      %s19 = int_to_ptr.vmem [resolvable:$true] %s18
      %24 = dma.hbm_to_vmem [thread:$0]  %s0, 384, %s19, [#allocation3], 128, 128, 8
    $region5: #{tpu_custom_call.1} parent=1 // pred_fallthru
      _
    // Predicated region
    $region6: #{tpu_custom_call.1} parent=1 // pred_check
      _
    $region7: #{tpu_custom_call.1} parent=1 // pred_check_branch
      %26 = sbr.rel (0) target = $region9
    $region8: #{tpu_custom_call.1} parent=1 // pred_region
      %s28 = ssub.s32 4096, 4096
      %29 = vsyncadd [#allocation6], %s28
      %s30 = sshll.u32 [#allocation5], 4
      %s31 = int_to_ptr.vmem [resolvable:$true] %s30
      %36 = dma.hbm_to_vmem [thread:$0]  %s1, 4096, %s31, [#allocation6], 512, 512, 32
    $region9: #{tpu_custom_call.1} parent=1 // pred_fallthru
      _
    // Predicated region
    $region10: #{tpu_custom_call.1} parent=1 // pred_check
      _
    $region11: #{tpu_custom_call.1} parent=1 // pred_check_branch
      %38 = sbr.rel (0) target = $region13
    $region12: #{tpu_custom_call.1} parent=1 // pred_region
      _
    $region13: #{tpu_custom_call.1} parent=1 // pred_fallthru
      _
    // Predicated region
    $region14: #{tpu_custom_call.1} parent=1 // pred_check
      _
    $region15: #{tpu_custom_call.1} parent=1 // pred_check_branch
      %40 = sbr.rel (0) target = $region17
    $region16: #{tpu_custom_call.1} parent=1 // pred_region
      %s42 = ssub.s32 8192, 8192
      %43 = vsyncadd [#allocation6], %s42
      %s44 = sshll.u32 [#allocation7], 4
      %s45 = int_to_ptr.vmem [resolvable:$true] %s44
      %50 = dma.hbm_to_vmem [thread:$0]  %s3, 8192, %s45, [#allocation6], 128, 128, 8
    $region17: #{tpu_custom_call.1} parent=1 // pred_fallthru
      _
    // Predicated region
    $region18: #{tpu_custom_call.1} parent=1 // pred_check
      _
    $region19: #{tpu_custom_call.1} parent=1 // pred_check_branch
      %52 = sbr.rel (0) target = $region21
    $region20: #{tpu_custom_call.1} parent=1 // pred_region
      _
    $region21: #{tpu_custom_call.1} parent=1 // pred_fallthru
      _
    // Predicated region
    $region22: #{tpu_custom_call.1} parent=1 // pred_check
      _
    $region23: #{tpu_custom_call.1} parent=1 // pred_check_branch
      %54 = sbr.rel (0) target = $region25
    $region24: #{tpu_custom_call.1} parent=1 // pred_region
      %55 = dma.done [#allocation3], 384
    $region25: #{tpu_custom_call.1} parent=1 // pred_fallthru
      _
    // Predicated region
    $region26: #{tpu_custom_call.1} parent=1 // pred_check
      _
    $region27: #{tpu_custom_call.1} parent=1 // pred_check_branch
      %57 = sbr.rel (0) target = $region29
    $region28: #{tpu_custom_call.1} parent=1 // pred_region
      %58 = dma.done [#allocation6], 4096
    $region29: #{tpu_custom_call.1} parent=1 // pred_fallthru
      _
    // Predicated region
    $region30: #{tpu_custom_call.1} parent=1 // pred_check
      _
    $region31: #{tpu_custom_call.1} parent=1 // pred_check_branch
      %60 = sbr.rel (0) target = $region33
    $region32: #{tpu_custom_call.1} parent=1 // pred_region
      %61 = dma.done [#allocation6], 8192
    $region33: #{tpu_custom_call.1} parent=1 // pred_fallthru
      _
    %v62 = vld [vmem:[#allocation2] sm:$0xff]
    %v63 = vld [vmem:[#allocation2 + $0x8] sm:$0xff]
    %v64 = vld [vmem:[#allocation2 + $0x10] sm:$0xff]
    %v65 = vld [vmem:[#allocation5] sm:$0xff]
    %v66 = vld [vmem:[#allocation5 + $0x8] sm:$0xff]
    %v67 = vld [vmem:[#allocation5 + $0x10] sm:$0xff]
    %v68 = vld [vmem:[#allocation5 + $0x18] sm:$0xff]
    %v69 = vld [vmem:[#allocation5 + $0x20] sm:$0xff]
    %v70 = vld [vmem:[#allocation5 + $0x28] sm:$0xff]
    %v71 = vld [vmem:[#allocation5 + $0x30] sm:$0xff]
    %v72 = vld [vmem:[#allocation5 + $0x38] sm:$0xff]
    %v73 = vld [vmem:[#allocation5 + $0x40] sm:$0xff]
    %v74 = vld [vmem:[#allocation5 + $0x48] sm:$0xff]
    %v75 = vld [vmem:[#allocation5 + $0x50] sm:$0xff]
    %v76 = vld [vmem:[#allocation5 + $0x58] sm:$0xff]
    %v77 = vld [vmem:[#allocation5 + $0x60] sm:$0xff]
    %v78 = vld [vmem:[#allocation5 + $0x68] sm:$0xff]
    %v79 = vld [vmem:[#allocation5 + $0x70] sm:$0xff]
    %v80 = vld [vmem:[#allocation5 + $0x78] sm:$0xff]
    %v81 = vld [vmem:[#allocation5 + $0x80] sm:$0xff]
    %v82 = vld [vmem:[#allocation5 + $0x88] sm:$0xff]
    %v83 = vld [vmem:[#allocation5 + $0x90] sm:$0xff]
    %v84 = vld [vmem:[#allocation5 + $0x98] sm:$0xff]
    %v85 = vld [vmem:[#allocation5 + $0xa0] sm:$0xff]
    %v86 = vld [vmem:[#allocation5 + $0xa8] sm:$0xff]
    %v87 = vld [vmem:[#allocation5 + $0xb0] sm:$0xff]
    %v88 = vld [vmem:[#allocation5 + $0xb8] sm:$0xff]
    %v89 = vld [vmem:[#allocation5 + $0xc0] sm:$0xff]
    %v90 = vld [vmem:[#allocation5 + $0xc8] sm:$0xff]
    %v91 = vld [vmem:[#allocation5 + $0xd0] sm:$0xff]
    %v92 = vld [vmem:[#allocation5 + $0xd8] sm:$0xff]
    %v93 = vld [vmem:[#allocation5 + $0xe0] sm:$0xff]
    %v94 = vld [vmem:[#allocation5 + $0xe8] sm:$0xff]
    %v95 = vld [vmem:[#allocation5 + $0xf0] sm:$0xff]
    %v96 = vld [vmem:[#allocation5 + $0xf8] sm:$0xff]
    %v97 = vld [vmem:[%s2] sm:$0xf]
    %v99 = vlaneseq
    %v100 = vshrl.u32 %v99, 7
    %v101 = vsub.s32 0, %v100
    %v102 = vrot.slane %v97, %v101
    %v103 = vlaneseq
    %v104 = vshrl.u32 %v103, 7
    %v105 = vsub.s32 1, %v104
    %v106 = vrot.slane %v97, %v105
    %v107 = vlaneseq
    %v108 = vshrl.u32 %v107, 7
    %v109 = vsub.s32 2, %v108
    %v110 = vrot.slane %v97, %v109
    %v111 = vlaneseq
    %v112 = vshrl.u32 %v111, 7
    %v113 = vsub.s32 3, %v112
    %v114 = vrot.slane %v97, %v113
    %vm119 = vcmask 523264
    %v121 = vsel %vm119, %v62, 0
    %v124 = vsel %vm119, %v63, 0
    %v127 = vsel %vm119, %v64, 0
    %129 = vmatprep.subr.mxu0 %v66
    %130 = vmatpush1.msra.mxu0 %v65
    %131 = vmatprep.subr.mxu0 %v70
    %132 = vmatpush1.msra.mxu0 %v69
    %133 = vmatprep.subr.mxu0 %v74
    %134 = vmatpush1.msra.mxu0 %v73
    %135 = vmatprep.subr.mxu0 %v78
    %136 = vmatpush1.msra.mxu0 %v77
    %137 = vmatprep.subr.mxu0 %v82
    %138 = vmatpush1.msra.mxu0 %v81
    %139 = vmatprep.subr.mxu0 %v86
    %140 = vmatpush1.msra.mxu0 %v85
    %141 = vmatprep.subr.mxu0 %v90
    %142 = vmatpush1.msra.mxu0 %v89
    %143 = vmatprep.subr.mxu0 %v94
    %144 = vmatpush1.msra.mxu0 %v93
    %145 = vmatprep.subr.mxu0 0.0
    %146 = vmatpush1.msra.mxu0 0.0
    %147 = vmatprep.subr.mxu0 0.0
    %148 = vmatpush1.msra.mxu0 0.0
    %149 = vmatprep.subr.mxu0 0.0
    %150 = vmatpush1.msra.mxu0 0.0
    %151 = vmatprep.subr.mxu0 0.0
    %152 = vmatpush1.msra.mxu0 0.0
    %153 = vmatprep.subr.mxu0 0.0
    %154 = vmatpush1.msra.mxu0 0.0
    %155 = vmatprep.subr.mxu0 0.0
    %156 = vmatpush1.msra.mxu0 0.0
    %157 = vmatprep.subr.mxu0 0.0
    %158 = vmatpush1.msra.mxu0 0.0
    %159 = vmatprep.subr.mxu0 0.0
    %160 = vmatpush1.msra.mxu0 0.0
    %161 = vmatprep.subr.mxu0 0.0
    %162 = vmatpush1.msra.mxu0 0.0
    %163 = vmatprep.subr.mxu0 0.0
    %164 = vmatpush1.msra.mxu0 0.0
    %165 = vmatprep.subr.mxu0 0.0
    %166 = vmatpush1.msra.mxu0 0.0
    %167 = vmatprep.subr.mxu0 0.0
    %168 = vmatpush1.msra.mxu0 0.0
    %169 = vmatprep.subr.mxu0 0.0
    %170 = vmatpush1.msra.mxu0 0.0
    %171 = vmatprep.subr.mxu0 0.0
    %172 = vmatpush1.msra.mxu0 0.0
    %173 = vmatprep.subr.mxu0 0.0
    %174 = vmatpush1.msra.mxu0 0.0
    %175 = vmatprep.subr.mxu0 0.0
    %176 = vmatpush1.msra.mxu0 0.0
    %177 = vmatprep.subr.mxu0 0.0
    %178 = vmatpush1.msra.mxu0 0.0
    %179 = vmatprep.subr.mxu0 0.0
    %180 = vmatpush1.msra.mxu0 0.0
    %181 = vmatprep.subr.mxu0 0.0
    %182 = vmatpush1.msra.mxu0 0.0
    %183 = vmatprep.subr.mxu0 0.0
    %184 = vmatpush1.msra.mxu0 0.0
    %185 = vmatprep.subr.mxu0 0.0
    %186 = vmatpush1.msra.mxu0 0.0
    %187 = vmatprep.subr.mxu0 0.0
    %188 = vmatpush1.msra.mxu0 0.0
    %189 = vmatprep.subr.mxu0 0.0
    %190 = vmatpush1.msra.mxu0 0.0
    %191 = vmatprep.subr.mxu0 0.0
    %192 = vmatpush1.msra.mxu0 0.0
    %193 = vmatprep.mubr.f32.mxu0 0.0
    %194 = vmatmul.mubr.f32.gmra.mrb[0].mxu0 %v121
    %v195 = vpop.f32.mrb[0].mxu0
    %v196 = vadd.f32 %v102, %v195
    %v197 = vpop.f32.mrb[0].mxu0
    %v198 = vadd.f32 %v106, %v197
    %199 = vmatprep.mubr.f32.mxu0 0.0
    %200 = vmatmul.mubr.f32.gmra.mrb[0].mxu0 %v124
    %v201 = vpop.f32.mrb[0].mxu0
    %v202 = vadd.f32 %v102, %v201
    %v203 = vpop.f32.mrb[0].mxu0
    %v204 = vadd.f32 %v106, %v203
    %205 = vmatprep.mubr.f32.mxu0 0.0
    %206 = vmatmul.mubr.f32.gmra.mrb[0].mxu0 %v127
    %v207 = vpop.f32.mrb[0].mxu0
    %v208 = vadd.f32 %v102, %v207
    %v209 = vpop.f32.mrb[0].mxu0
    %v210 = vadd.f32 %v106, %v209
    %211 = vdwg.mxu0
    %212 = vmatprep.subr.mxu0 %v68
    %213 = vmatpush1.msra.mxu0 %v67
    %214 = vmatprep.subr.mxu0 %v72
    %215 = vmatpush1.msra.mxu0 %v71
    %216 = vmatprep.subr.mxu0 %v76
    %217 = vmatpush1.msra.mxu0 %v75
    %218 = vmatprep.subr.mxu0 %v80
    %219 = vmatpush1.msra.mxu0 %v79
    %220 = vmatprep.subr.mxu0 %v84
    %221 = vmatpush1.msra.mxu0 %v83
    %222 = vmatprep.subr.mxu0 %v88
    %223 = vmatpush1.msra.mxu0 %v87
    %224 = vmatprep.subr.mxu0 %v92
    %225 = vmatpush1.msra.mxu0 %v91
    %226 = vmatprep.subr.mxu0 %v96
    %227 = vmatpush1.msra.mxu0 %v95
    %228 = vmatprep.subr.mxu0 0.0
    %229 = vmatpush1.msra.mxu0 0.0
    %230 = vmatprep.subr.mxu0 0.0
    %231 = vmatpush1.msra.mxu0 0.0
    %232 = vmatprep.subr.mxu0 0.0
    %233 = vmatpush1.msra.mxu0 0.0
    %234 = vmatprep.subr.mxu0 0.0
    %235 = vmatpush1.msra.mxu0 0.0
    %236 = vmatprep.subr.mxu0 0.0
    %237 = vmatpush1.msra.mxu0 0.0
    %238 = vmatprep.subr.mxu0 0.0
    %239 = vmatpush1.msra.mxu0 0.0
    %240 = vmatprep.subr.mxu0 0.0
    %241 = vmatpush1.msra.mxu0 0.0
    %242 = vmatprep.subr.mxu0 0.0
    %243 = vmatpush1.msra.mxu0 0.0
    %244 = vmatprep.subr.mxu0 0.0
    %245 = vmatpush1.msra.mxu0 0.0
    %246 = vmatprep.subr.mxu0 0.0
    %247 = vmatpush1.msra.mxu0 0.0
    %248 = vmatprep.subr.mxu0 0.0
    %249 = vmatpush1.msra.mxu0 0.0
    %250 = vmatprep.subr.mxu0 0.0
    %251 = vmatpush1.msra.mxu0 0.0
    %252 = vmatprep.subr.mxu0 0.0
    %253 = vmatpush1.msra.mxu0 0.0
    %254 = vmatprep.subr.mxu0 0.0
    %255 = vmatpush1.msra.mxu0 0.0
    %256 = vmatprep.subr.mxu0 0.0
    %257 = vmatpush1.msra.mxu0 0.0
    %258 = vmatprep.subr.mxu0 0.0
    %259 = vmatpush1.msra.mxu0 0.0
    %260 = vmatprep.subr.mxu0 0.0
    %261 = vmatpush1.msra.mxu0 0.0
    %262 = vmatprep.subr.mxu0 0.0
    %263 = vmatpush1.msra.mxu0 0.0
    %264 = vmatprep.subr.mxu0 0.0
    %265 = vmatpush1.msra.mxu0 0.0
    %266 = vmatprep.subr.mxu0 0.0
    %267 = vmatpush1.msra.mxu0 0.0
    %268 = vmatprep.subr.mxu0 0.0
    %269 = vmatpush1.msra.mxu0 0.0
    %270 = vmatprep.subr.mxu0 0.0
    %271 = vmatpush1.msra.mxu0 0.0
    %272 = vmatprep.subr.mxu0 0.0
    %273 = vmatpush1.msra.mxu0 0.0
    %274 = vmatprep.subr.mxu0 0.0
    %275 = vmatpush1.msra.mxu0 0.0
    %276 = vmatprep.mubr.f32.mxu0 0.0
    %277 = vmatmul.mubr.f32.gmra.mrb[0].mxu0 %v121
    %v278 = vpop.f32.mrb[0].mxu0
    %v279 = vadd.f32 %v110, %v278
    %v280 = vpop.f32.mrb[0].mxu0
    %v281 = vadd.f32 %v114, %v280
    %282 = vmatprep.mubr.f32.mxu0 0.0
    %283 = vmatmul.mubr.f32.gmra.mrb[0].mxu0 %v124
    %v284 = vpop.f32.mrb[0].mxu0
    %v285 = vadd.f32 %v110, %v284
    %v286 = vpop.f32.mrb[0].mxu0
    %v287 = vadd.f32 %v114, %v286
    %288 = vmatprep.mubr.f32.mxu0 0.0
    %289 = vmatmul.mubr.f32.gmra.mrb[0].mxu0 %v127
    %v290 = vpop.f32.mrb[0].mxu0
    %v291 = vadd.f32 %v110, %v290
    %v292 = vpop.f32.mrb[0].mxu0
    %v293 = vadd.f32 %v114, %v292
    %294 = vdwg.mxu0
    %v295 = vmax.f32 %v196, 0.0
    %v296 = vmax.f32 %v198, 0.0
    %v297 = vmax.f32 %v279, 0.0
    %v298 = vmax.f32 %v281, 0.0
    %v299 = vmax.f32 %v202, 0.0
    %v300 = vmax.f32 %v204, 0.0
    %v301 = vmax.f32 %v285, 0.0
    %v302 = vmax.f32 %v287, 0.0
    %v303 = vmax.f32 %v208, 0.0
    %v304 = vmax.f32 %v210, 0.0
    %v305 = vmax.f32 %v291, 0.0
    %v306 = vmax.f32 %v293, 0.0
    %v307 = vld [vmem:[#allocation7] sm:$0xff]
    %v308 = vld [vmem:[#allocation7 + $0x8] sm:$0xff]
    %v309 = vld [vmem:[#allocation7 + $0x10] sm:$0xff]
    %v310 = vld [vmem:[#allocation7 + $0x18] sm:$0xff]
    %v311 = vld [vmem:[#allocation7 + $0x20] sm:$0xff]
    %v312 = vld [vmem:[#allocation7 + $0x28] sm:$0xff]
    %v313 = vld [vmem:[#allocation7 + $0x30] sm:$0xff]
    %v314 = vld [vmem:[#allocation7 + $0x38] sm:$0xff]
    %v315 = vld [vmem:[#allocation7 + $0x40] sm:$0xff]
    %v316 = vld [vmem:[#allocation7 + $0x48] sm:$0xff]
    %v317 = vld [vmem:[#allocation7 + $0x50] sm:$0xff]
    %v318 = vld [vmem:[#allocation7 + $0x58] sm:$0xff]
    %v319 = vld [vmem:[#allocation7 + $0x60] sm:$0xff]
    %v320 = vld [vmem:[#allocation7 + $0x68] sm:$0xff]
    %v321 = vld [vmem:[#allocation7 + $0x70] sm:$0xff]
    %v322 = vld [vmem:[#allocation7 + $0x78] sm:$0xff]
    %v323 = vld [vmem:[#allocation7 + $0x80] sm:$0xff]
    %v324 = vld [vmem:[#allocation7 + $0x88] sm:$0xff]
    %v325 = vld [vmem:[#allocation7 + $0x90] sm:$0xff]
    %v326 = vld [vmem:[#allocation7 + $0x98] sm:$0xff]
    %v327 = vld [vmem:[#allocation7 + $0xa0] sm:$0xff]
    %v328 = vld [vmem:[#allocation7 + $0xa8] sm:$0xff]
    %v329 = vld [vmem:[#allocation7 + $0xb0] sm:$0xff]
    %v330 = vld [vmem:[#allocation7 + $0xb8] sm:$0xff]
    %v331 = vld [vmem:[#allocation7 + $0xc0] sm:$0xff]
    %v332 = vld [vmem:[#allocation7 + $0xc8] sm:$0xff]
    %v333 = vld [vmem:[#allocation7 + $0xd0] sm:$0xff]
    %v334 = vld [vmem:[#allocation7 + $0xd8] sm:$0xff]
    %v335 = vld [vmem:[#allocation7 + $0xe0] sm:$0xff]
    %v336 = vld [vmem:[#allocation7 + $0xe8] sm:$0xff]
    %v337 = vld [vmem:[#allocation7 + $0xf0] sm:$0xff]
    %v338 = vld [vmem:[#allocation7 + $0xf8] sm:$0xff]
    %v339 = vld [vmem:[#allocation7 + $0x100] sm:$0xff]
    %v340 = vld [vmem:[#allocation7 + $0x108] sm:$0xff]
    %v341 = vld [vmem:[#allocation7 + $0x110] sm:$0xff]
    %v342 = vld [vmem:[#allocation7 + $0x118] sm:$0xff]
    %v343 = vld [vmem:[#allocation7 + $0x120] sm:$0xff]
    %v344 = vld [vmem:[#allocation7 + $0x128] sm:$0xff]
    %v345 = vld [vmem:[#allocation7 + $0x130] sm:$0xff]
    %v346 = vld [vmem:[#allocation7 + $0x138] sm:$0xff]
    %v347 = vld [vmem:[#allocation7 + $0x140] sm:$0xff]
    %v348 = vld [vmem:[#allocation7 + $0x148] sm:$0xff]
    %v349 = vld [vmem:[#allocation7 + $0x150] sm:$0xff]
    %v350 = vld [vmem:[#allocation7 + $0x158] sm:$0xff]
    %v351 = vld [vmem:[#allocation7 + $0x160] sm:$0xff]
    %v352 = vld [vmem:[#allocation7 + $0x168] sm:$0xff]
    %v353 = vld [vmem:[#allocation7 + $0x170] sm:$0xff]
    %v354 = vld [vmem:[#allocation7 + $0x178] sm:$0xff]
    %v355 = vld [vmem:[#allocation7 + $0x180] sm:$0xff]
    %v356 = vld [vmem:[#allocation7 + $0x188] sm:$0xff]
    %v357 = vld [vmem:[#allocation7 + $0x190] sm:$0xff]
    %v358 = vld [vmem:[#allocation7 + $0x198] sm:$0xff]
    %v359 = vld [vmem:[#allocation7 + $0x1a0] sm:$0xff]
    %v360 = vld [vmem:[#allocation7 + $0x1a8] sm:$0xff]
    %v361 = vld [vmem:[#allocation7 + $0x1b0] sm:$0xff]
    %v362 = vld [vmem:[#allocation7 + $0x1b8] sm:$0xff]
    %v363 = vld [vmem:[#allocation7 + $0x1c0] sm:$0xff]
    %v364 = vld [vmem:[#allocation7 + $0x1c8] sm:$0xff]
    %v365 = vld [vmem:[#allocation7 + $0x1d0] sm:$0xff]
    %v366 = vld [vmem:[#allocation7 + $0x1d8] sm:$0xff]
    %v367 = vld [vmem:[#allocation7 + $0x1e0] sm:$0xff]
    %v368 = vld [vmem:[#allocation7 + $0x1e8] sm:$0xff]
    %v369 = vld [vmem:[#allocation7 + $0x1f0] sm:$0xff]
    %v370 = vld [vmem:[#allocation7 + $0x1f8] sm:$0xff]
    %v371 = vld [vmem:[%s4] sm:$0x1]
    %v373 = vlaneseq
    %v374 = vshrl.u32 %v373, 7
    %v375 = vsub.s32 0, %v374
    %v376 = vrot.slane %v371, %v375
    %378 = vmatprep.subr.mxu0 0.0
    %379 = vmatpush1.msra.mxu0 %v307
    %380 = vmatprep.subr.mxu0 0.0
    %381 = vmatpush1.msra.mxu0 %v308
    %382 = vmatprep.subr.mxu0 0.0
    %383 = vmatpush1.msra.mxu0 %v309
    %384 = vmatprep.subr.mxu0 0.0
    %385 = vmatpush1.msra.mxu0 %v310
    %386 = vmatprep.subr.mxu0 0.0
    %387 = vmatpush1.msra.mxu0 %v311
    %388 = vmatprep.subr.mxu0 0.0
    %389 = vmatpush1.msra.mxu0 %v312
    %390 = vmatprep.subr.mxu0 0.0
    %391 = vmatpush1.msra.mxu0 %v313
    %392 = vmatprep.subr.mxu0 0.0
    %393 = vmatpush1.msra.mxu0 %v314
    %394 = vmatprep.subr.mxu0 0.0
    %395 = vmatpush1.msra.mxu0 %v315
    %396 = vmatprep.subr.mxu0 0.0
    %397 = vmatpush1.msra.mxu0 %v316
    %398 = vmatprep.subr.mxu0 0.0
    %399 = vmatpush1.msra.mxu0 %v317
    %400 = vmatprep.subr.mxu0 0.0
    %401 = vmatpush1.msra.mxu0 %v318
    %402 = vmatprep.subr.mxu0 0.0
    %403 = vmatpush1.msra.mxu0 %v319
    %404 = vmatprep.subr.mxu0 0.0
    %405 = vmatpush1.msra.mxu0 %v320
    %406 = vmatprep.subr.mxu0 0.0
    %407 = vmatpush1.msra.mxu0 %v321
    %408 = vmatprep.subr.mxu0 0.0
    %409 = vmatpush1.msra.mxu0 %v322
    %410 = vmatprep.subr.mxu0 0.0
    %411 = vmatpush1.msra.mxu0 %v323
    %412 = vmatprep.subr.mxu0 0.0
    %413 = vmatpush1.msra.mxu0 %v324
    %414 = vmatprep.subr.mxu0 0.0
    %415 = vmatpush1.msra.mxu0 %v325
    %416 = vmatprep.subr.mxu0 0.0
    %417 = vmatpush1.msra.mxu0 %v326
    %418 = vmatprep.subr.mxu0 0.0
    %419 = vmatpush1.msra.mxu0 %v327
    %420 = vmatprep.subr.mxu0 0.0
    %421 = vmatpush1.msra.mxu0 %v328
    %422 = vmatprep.subr.mxu0 0.0
    %423 = vmatpush1.msra.mxu0 %v329
    %424 = vmatprep.subr.mxu0 0.0
    %425 = vmatpush1.msra.mxu0 %v330
    %426 = vmatprep.subr.mxu0 0.0
    %427 = vmatpush1.msra.mxu0 %v331
    %428 = vmatprep.subr.mxu0 0.0
    %429 = vmatpush1.msra.mxu0 %v332
    %430 = vmatprep.subr.mxu0 0.0
    %431 = vmatpush1.msra.mxu0 %v333
    %432 = vmatprep.subr.mxu0 0.0
    %433 = vmatpush1.msra.mxu0 %v334
    %434 = vmatprep.subr.mxu0 0.0
    %435 = vmatpush1.msra.mxu0 %v335
    %436 = vmatprep.subr.mxu0 0.0
    %437 = vmatpush1.msra.mxu0 %v336
    %438 = vmatprep.subr.mxu0 0.0
    %439 = vmatpush1.msra.mxu0 %v337
    %440 = vmatprep.subr.mxu0 0.0
    %441 = vmatpush1.msra.mxu0 %v338
    %442 = vmatprep.mubr.f32.mxu0 %v296
    %443 = vmatmul.mubr.f32.gmra.mrb[0].mxu0 %v295
    %v444 = vpop.f32.mrb[0].mxu0
    %v445 = vadd.f32 %v376, %v444
    %v446 = vpop.f32.mrb[0].mxu0
    %447 = vmatprep.mubr.f32.mxu0 %v300
    %448 = vmatmul.mubr.f32.gmra.mrb[0].mxu0 %v299
    %v449 = vpop.f32.mrb[0].mxu0
    %v450 = vadd.f32 %v376, %v449
    %v451 = vpop.f32.mrb[0].mxu0
    %452 = vmatprep.mubr.f32.mxu0 %v304
    %453 = vmatmul.mubr.f32.gmra.mrb[0].mxu0 %v303
    %v454 = vpop.f32.mrb[0].mxu0
    %v455 = vadd.f32 %v376, %v454
    %v456 = vpop.f32.mrb[0].mxu0
    %457 = vdwg.mxu0
    %458 = vmatprep.subr.mxu0 0.0
    %459 = vmatpush1.msra.mxu0 %v339
    %460 = vmatprep.subr.mxu0 0.0
    %461 = vmatpush1.msra.mxu0 %v340
    %462 = vmatprep.subr.mxu0 0.0
    %463 = vmatpush1.msra.mxu0 %v341
    %464 = vmatprep.subr.mxu0 0.0
    %465 = vmatpush1.msra.mxu0 %v342
    %466 = vmatprep.subr.mxu0 0.0
    %467 = vmatpush1.msra.mxu0 %v343
    %468 = vmatprep.subr.mxu0 0.0
    %469 = vmatpush1.msra.mxu0 %v344
    %470 = vmatprep.subr.mxu0 0.0
    %471 = vmatpush1.msra.mxu0 %v345
    %472 = vmatprep.subr.mxu0 0.0
    %473 = vmatpush1.msra.mxu0 %v346
    %474 = vmatprep.subr.mxu0 0.0
    %475 = vmatpush1.msra.mxu0 %v347
    %476 = vmatprep.subr.mxu0 0.0
    %477 = vmatpush1.msra.mxu0 %v348
    %478 = vmatprep.subr.mxu0 0.0
    %479 = vmatpush1.msra.mxu0 %v349
    %480 = vmatprep.subr.mxu0 0.0
    %481 = vmatpush1.msra.mxu0 %v350
    %482 = vmatprep.subr.mxu0 0.0
    %483 = vmatpush1.msra.mxu0 %v351
    %484 = vmatprep.subr.mxu0 0.0
    %485 = vmatpush1.msra.mxu0 %v352
    %486 = vmatprep.subr.mxu0 0.0
    %487 = vmatpush1.msra.mxu0 %v353
    %488 = vmatprep.subr.mxu0 0.0
    %489 = vmatpush1.msra.mxu0 %v354
    %490 = vmatprep.subr.mxu0 0.0
    %491 = vmatpush1.msra.mxu0 %v355
    %492 = vmatprep.subr.mxu0 0.0
    %493 = vmatpush1.msra.mxu0 %v356
    %494 = vmatprep.subr.mxu0 0.0
    %495 = vmatpush1.msra.mxu0 %v357
    %496 = vmatprep.subr.mxu0 0.0
    %497 = vmatpush1.msra.mxu0 %v358
    %498 = vmatprep.subr.mxu0 0.0
    %499 = vmatpush1.msra.mxu0 %v359
    %500 = vmatprep.subr.mxu0 0.0
    %501 = vmatpush1.msra.mxu0 %v360
    %502 = vmatprep.subr.mxu0 0.0
    %503 = vmatpush1.msra.mxu0 %v361
    %504 = vmatprep.subr.mxu0 0.0
    %505 = vmatpush1.msra.mxu0 %v362
    %506 = vmatprep.subr.mxu0 0.0
    %507 = vmatpush1.msra.mxu0 %v363
    %508 = vmatprep.subr.mxu0 0.0
    %509 = vmatpush1.msra.mxu0 %v364
    %510 = vmatprep.subr.mxu0 0.0
    %511 = vmatpush1.msra.mxu0 %v365
    %512 = vmatprep.subr.mxu0 0.0
    %513 = vmatpush1.msra.mxu0 %v366
    %514 = vmatprep.subr.mxu0 0.0
    %515 = vmatpush1.msra.mxu0 %v367
    %516 = vmatprep.subr.mxu0 0.0
    %517 = vmatpush1.msra.mxu0 %v368
    %518 = vmatprep.subr.mxu0 0.0
    %519 = vmatpush1.msra.mxu0 %v369
    %520 = vmatprep.subr.mxu0 0.0
    %521 = vmatpush1.msra.mxu0 %v370
    %522 = vmatprep.mubr.f32.mxu0 %v298
    %523 = vmatmul.mubr.f32.gmra.mrb[0].mxu0 %v297
    %v524 = vpop.f32.mrb[0].mxu0
    %v525 = vadd.f32 %v445, %v524
    %v526 = vpop.f32.mrb[0].mxu0
    %527 = vmatprep.mubr.f32.mxu0 %v302
    %528 = vmatmul.mubr.f32.gmra.mrb[0].mxu0 %v301
    %v529 = vpop.f32.mrb[0].mxu0
    %v530 = vadd.f32 %v450, %v529
    %v531 = vpop.f32.mrb[0].mxu0
    %532 = vmatprep.mubr.f32.mxu0 %v306
    %533 = vmatmul.mubr.f32.gmra.mrb[0].mxu0 %v305
    %v534 = vpop.f32.mrb[0].mxu0
    %v535 = vadd.f32 %v455, %v534
    %v536 = vpop.f32.mrb[0].mxu0
    %537 = vdwg.mxu0
    %538 = vst [vmem:[#allocation8] sm:$0xff] %v525
    %539 = vst [vmem:[#allocation8 + $0x8] sm:$0xff] %v530
    %540 = vst [vmem:[#allocation8 + $0x10] sm:$0xff] %v535
    // Predicated region
    $region34: #{tpu_custom_call.1} parent=1 // pred_check
      _
    $region35: #{tpu_custom_call.1} parent=1 // pred_check_branch
      %542 = sbr.rel (0) target = $region37
    $region36: #{tpu_custom_call.1} parent=1 // pred_region
      %s544 = ssub.s32 384, 384
      %545 = vsyncadd [#allocation4], %s544
      %s546 = sshll.u32 [#allocation8], 4
      %s547 = int_to_ptr.vmem [resolvable:$true] %s546
      %552 = dma.vmem_to_hbm [thread:$0]  %s547, 384, %s5, [#allocation4], 128, 128, 8
    $region37: #{tpu_custom_call.1} parent=1 // pred_fallthru
      _
    // Predicated region
    $region38: #{tpu_custom_call.1} parent=1 // pred_check
      _
    $region39: #{tpu_custom_call.1} parent=1 // pred_check_branch
      %554 = sbr.rel (0) target = $region41
    $region40: #{tpu_custom_call.1} parent=1 // pred_region
      %555 = dma.done [#allocation4], 384
    $region41: #{tpu_custom_call.1} parent=1 // pred_fallthru
      _
    %556 = vsyncpa [#allocation3], 1
    %557 = vsyncpa [#allocation6], 1
    %558 = vsyncpa [#allocation4], 1

</llo_original>
